<compile_context>
chip_gen: v7x
topology: tpu7x:2x2x1
jax: 0.10.0
libtpu: 0.0.40
codegen_flags: <defaults>
</compile_context>

<pallas_src>
import jax
import jax.numpy as jnp
from jax.experimental import pallas as pl
from jax.experimental.pallas import tpu as pltpu


def _concat_fused_kernel(x_ref, w_ref, b_ref, o_ref):
    # x_ref: (C_in, TILE)      -- pixel tile of one image, native NCHW layout
    # w_ref: (C_total, C_in)   -- all nets' 1x1-conv weights, fused & transposed
    # b_ref: (C_total, 1)      -- fused biases (broadcast over lanes)
    # o_ref: (C_total, TILE)   -- concatenated output channels for this tile
    y = jnp.dot(w_ref[...], x_ref[...], preferred_element_type=jnp.float32)
    y = y + b_ref[...]
    o_ref[...] = jnp.maximum(y, 0.0).astype(o_ref.dtype)


def _round_up(x, m):
    return ((x + m - 1) // m) * m


def _vmem_capacity_bytes():
    try:
        return int(pltpu.get_tpu_info().vmem_capacity_bytes)
    except Exception:
        return 64 << 20  # conservative (v7x per-core) fallback


def _choose_tile(hw_pad, n_images, c_in, c_total, budget_bytes, max_tile=8192):
    """Largest multiple-of-128 tile that (a) divides hw_pad exactly, (b) keeps
    the double-buffered input+output tiles within `budget_bytes`, and
    (c) leaves >= 2 total grid steps when possible (v7x megacore)."""
    n128 = hw_pad // 128
    per_lane = 4 * 2 * (c_in + c_total)        # f32, double-buffered in + out
    fixed = 4 * (c_total * c_in + c_total)     # resident fused weights + bias
    max_lanes = max(128, (budget_bytes - fixed) // per_lane)
    cap = min(hw_pad, max_tile, (max_lanes // 128) * 128)
    cap128 = max(1, cap // 128)

    # Largest divisor of n128 that is <= cap128.
    tile128 = 1
    for d in range(min(n128, cap128), 0, -1):
        if n128 % d == 0:
            tile128 = d
            break

    # Guarantee >= 2 grid steps so both v7x TensorCores get work, if possible.
    if n_images * (n128 // tile128) < 2 and n128 >= 2:
        for d in range(tile128 - 1, 0, -1):
            if n128 % d == 0 and (n128 // d) >= 2:
                tile128 = d
                break
    return tile128 * 128


def concat_forward(x_nchw, weights, biases, *, out_dtype=jnp.float32):
    """Pallas implementation of Concat([net_0, ..., net_{k-1}])(x).

    x_nchw : [N, C_in, H, W]            float32
    weights: [num_nets, C_in, C_out]    float32  (1x1 conv kernels, per net)
    biases : [num_nets, 1, C_out]       float32
    returns: [N, num_nets * C_out, H, W]  out_dtype (concat along channel dim)
    """
    N, C_in, H, W = x_nchw.shape
    num_nets, _, C_out = weights.shape
    C_total = num_nets * C_out
    HW = H * W

    # Native layout: pixels on lanes, no NCHW<->NHWC transposes.
    x_hw = x_nchw.reshape(N, C_in, HW)

    # Pad the pixel axis only to the next multiple of 128 (lane granularity).
    HW_pad = _round_up(HW, 128)
    if HW_pad != HW:
        x_hw = jnp.pad(x_hw, ((0, 0), (0, 0), (0, HW_pad - HW)))

    # Per-generation VMEM-aware tile selection (HBM-write-bound kernel, so the
    # tile should be as large as the double-buffered output slab allows).
    vmem_bytes = _vmem_capacity_bytes()
    budget = vmem_bytes // 4
    tile = _choose_tile(HW_pad, N, C_in, C_total, budget)

    needed = (2 * tile * 4 * (C_in + C_total)        # double-buffered in/out tiles
              + 4 * C_total * C_in + 4 * C_total)    # resident weights + bias
    vmem_limit = int(min(vmem_bytes // 2, max(needed + (4 << 20), 16 << 20)))

    # Fuse all nets into one weight / bias:
    #   W_T[n*C_out + d, c] = weights[n, c, d]  -> the channel concat is just
    #   the row ordering of the fused matrix.
    w_t = jnp.transpose(weights, (0, 2, 1)).reshape(C_total, C_in)
    b_col = biases.reshape(C_total, 1)

    grid = (N, HW_pad // tile)  # (image, pixel tile) — both independent

    out_elt_bytes = jnp.dtype(out_dtype).itemsize
    flops = 2 * N * HW_pad * C_in * C_total
    bytes_accessed = (
        4 * N * HW_pad * C_in
        + out_elt_bytes * N * HW_pad * C_total
        + 4 * C_total * C_in
        + 4 * C_total
    )

    out_flat = pl.pallas_call(
        _concat_fused_kernel,
        out_shape=jax.ShapeDtypeStruct((N, C_total, HW_pad), out_dtype),
        grid_spec=pltpu.PrefetchScalarGridSpec(
            num_scalar_prefetch=0,
            grid=grid,
            in_specs=[
                # shared input tile (batch dim squeezed out of the kernel view)
                pl.BlockSpec((pl.Squeezed(), C_in, tile), lambda b, j: (b, 0, j)),
                # fused weights / bias: same block every step (VMEM-resident)
                pl.BlockSpec((C_total, C_in), lambda b, j: (0, 0)),
                pl.BlockSpec((C_total, 1), lambda b, j: (0, 0)),
            ],
            out_specs=pl.BlockSpec(
                (pl.Squeezed(), C_total, tile), lambda b, j: (b, 0, j)
            ),
        ),
        compiler_params=pltpu.CompilerParams(
            dimension_semantics=("parallel", "parallel"),
            vmem_limit_bytes=vmem_limit,
        ),
        cost_estimate=pl.CostEstimate(
            flops=flops, transcendentals=0, bytes_accessed=bytes_accessed
        ),
    )(x_hw, w_t, b_col)

    # Only slice if we actually padded (avoids an extra full-output HBM round
    # trip in the 128-aligned common case); reshape is free.
    if HW_pad != HW:
        out_flat = out_flat[:, :, :HW]
    return out_flat.reshape(N, C_total, H, W)


def _reference(x_nchw, weights, biases):
    # pure-JAX reference: per-net 1x1 conv + bias + relu, concat along dim=1
    outs = []
    for n in range(weights.shape[0]):
        y = jnp.einsum("nchw,cd->ndhw", x_nchw, weights[n])
        y = y + biases[n, 0][None, :, None, None]
        outs.append(jnp.maximum(y, 0.0))
    return jnp.concatenate(outs, axis=1)


if __name__ == "__main__":
    key = jax.random.PRNGKey(0)
    k_x, k_w, k_b = jax.random.split(key, 3)

    # small shapes consistent with the module's forward
    N, C_in, H, W = 2, 4, 16, 16
    num_nets, C_out = 2, 128

    x = jax.random.normal(k_x, (N, C_in, H, W), dtype=jnp.float32)
    weights = (
        jax.random.normal(k_w, (num_nets, C_in, C_out), dtype=jnp.float32) * 0.1
    )
    biases = (
        jax.random.normal(k_b, (num_nets, 1, C_out), dtype=jnp.float32) * 0.1
    )

    out = concat_forward(x, weights, biases)
    out = jax.block_until_ready(out)

    ref = _reference(x, weights, biases)
    assert out.shape == (N, num_nets * C_out, H, W), out.shape
    assert jnp.allclose(out, ref, atol=1e-5, rtol=1e-5), "mismatch vs reference"

    print("KERNEL_OK")
</pallas_src>

<mosaic_0001>
module attributes {stable_mosaic.version = 11 : i64} {
  func.func @_concat_fused_kernel(%arg0: i32, %arg1: i32, %arg2: memref<1x4x256xf32, #tpu.memory_space<vmem>>, %arg3: memref<256x4xf32, #tpu.memory_space<vmem>>, %arg4: memref<256x1xf32, #tpu.memory_space<vmem>>, %arg5: memref<1x256x256xf32, #tpu.memory_space<vmem>>) attributes {dimension_semantics = [#tpu.dimension_semantics<parallel>, #tpu.dimension_semantics<parallel>], iteration_bounds = array<i64: 2, 1>, scalar_prefetch = 0 : i64, scratch_operands = 0 : i64, tpu.core_type = #tpu.core_type<tc>, window_params = [{transform_indices = @transform_0, window_bounds = array<i64: 1, 4, 256>}, {pipeline_mode = #tpu.pipeline_mode<synchronous>, transform_indices = @transform_1, window_bounds = array<i64: 256, 4>}, {pipeline_mode = #tpu.pipeline_mode<synchronous>, transform_indices = @transform_2, window_bounds = array<i64: 256, 1>}, {transform_indices = @transform_3, window_bounds = array<i64: 1, 256, 256>}]} {
    %c0 = arith.constant 0 : index
    %c0_0 = arith.constant 0 : index
    %0 = vector.load %arg3[%c0, %c0_0] : memref<256x4xf32, #tpu.memory_space<vmem>>, vector<256x4xf32>
    %c0_1 = arith.constant 0 : index
    %c0_2 = arith.constant 0 : index
    %c0_3 = arith.constant 0 : index
    %1 = vector.load %arg2[%c0_1, %c0_2, %c0_3] : memref<1x4x256xf32, #tpu.memory_space<vmem>>, vector<1x4x256xf32>
    %2 = vector.shape_cast %1 : vector<1x4x256xf32> to vector<4x256xf32>
    %cst = arith.constant dense<0.000000e+00> : vector<256x256xf32>
    %3 = tpu.matmul %0, %2, %cst {dimension_numbers = #tpu.dot_dimension_numbers<[1], [0], [0], [1], [0, 0, 1, 1], [], []>} : vector<256x4xf32>, vector<4x256xf32>, vector<256x256xf32> -> vector<256x256xf32>
    %c0_4 = arith.constant 0 : index
    %c0_5 = arith.constant 0 : index
    %4 = vector.load %arg4[%c0_4, %c0_5] : memref<256x1xf32, #tpu.memory_space<vmem>>, vector<256x1xf32>
    %5 = vector.broadcast %4 : vector<256x1xf32> to vector<256x256xf32>
    %6 = arith.addf %3, %5 : vector<256x256xf32>
    %cst_6 = arith.constant 0.000000e+00 : f32
    %7 = vector.broadcast %cst_6 : f32 to vector<256x256xf32>
    %8 = arith.maximumf %6, %7 : vector<256x256xf32>
    %c0_7 = arith.constant 0 : index
    %c0_8 = arith.constant 0 : index
    %c0_9 = arith.constant 0 : index
    %9 = vector.load %arg5[%c0_7, %c0_8, %c0_9] : memref<1x256x256xf32, #tpu.memory_space<vmem>>, vector<1x256x256xf32>
    %10 = vector.shape_cast %9 : vector<1x256x256xf32> to vector<256x256xf32>
    %11 = vector.shape_cast %8 : vector<256x256xf32> to vector<1x256x256xf32>
    tpu.vector_store %arg5[%c0_7, %c0_8, %c0_9], %11 {strides = array<i32>} : memref<1x256x256xf32, #tpu.memory_space<vmem>>, vector<1x256x256xf32>,
    return
  }
  func.func @transform_0(%arg0: i32, %arg1: i32) -> (i32, i32, i32) {
    %c0_i32 = arith.constant 0 : i32
    %c0_i32_0 = arith.constant 0 : i32
    return %arg0, %c0_i32, %arg1 : i32, i32, i32
  }
  func.func @transform_1(%arg0: i32, %arg1: i32) -> (i32, i32) {
    %c0_i32 = arith.constant 0 : i32
    %c0_i32_0 = arith.constant 0 : i32
    %c0_i32_1 = arith.constant 0 : i32
    return %c0_i32, %c0_i32_0 : i32, i32
  }
  func.func @transform_2(%arg0: i32, %arg1: i32) -> (i32, i32) {
    %c0_i32 = arith.constant 0 : i32
    %c0_i32_0 = arith.constant 0 : i32
    %c0_i32_1 = arith.constant 0 : i32
    return %c0_i32, %c0_i32_0 : i32, i32
  }
  func.func @transform_3(%arg0: i32, %arg1: i32) -> (i32, i32, i32) {
    %c0_i32 = arith.constant 0 : i32
    %c0_i32_0 = arith.constant 0 : i32
    return %arg0, %c0_i32, %arg1 : i32, i32, i32
  }
}

</mosaic_0001>

<llo_original>
// kernel: tpu_custom_call.1
$region0: #{tpu_custom_call.1}
  #allocation0 [shape = 'u32[]', space=smem, size = 0x4, offset = 0x4, fixed_abs, tag = 'smem constant byte address 0x4 - core index']
  #allocation1 [shape = 'u32[144,128]{1,0:T(1,128)}', space=vmem, size = 0x12000, scoped, tag = 'internal scratch']
  %s0 = inlined_call_operand.vmem [shape: f32[2,4,256], index: 0, kind: input, shape index: {}]
  %s1 = inlined_call_operand.vmem [shape: f32[256,4], index: 1, kind: input, shape index: {}]
  %s2 = inlined_call_operand.vmem [shape: f32[256,1], index: 2, kind: input, shape index: {}]
  %s3 = inlined_call_operand.hbm [shape: f32[2,256,256], index: 3, kind: output, shape index: {}]
  %s4 = sld [smem:[#allocation0]]
  $region45: #{tpu_custom_call.1} parent=0
    _
  %s6 = ssub.s32 1, %s4
  %s7 = scalar_select 0, %s6, %s4
  $region1: #{tpu_custom_call.1} parent=0
    #allocation2 [shape = 'u8[524288]{0}', space=vmem, size = 0x80000, scoped, tag = 'output window, operand 0']
    #allocation3 [shape = 's32[2]{0}', space=sflag, size = 0x8, scoped, tag = 'scoped memory for tpu_custom_call.1']
    %8 = vsyncpa [#allocation3], 0
    %s9 = scalar_lea.sflag [#allocation3], 1
    %10 = vsyncpa %s9, 0
    loop: start=0, step=1, limit=4
    $region2: #{tpu_custom_call.1} parent=1 // loop_pre_header
      _
    $region3: #{tpu_custom_call.1} parent=1 // loop_header
      %s12 = sphi 0, %s16
      %p13 = scmp.ge.s32.totalorder %s12, 4
      %s19 = sphi 0, %s31
      %s20 = sphi 0, %s27
      %s21 = sphi 0, %s19
      %s22 = sphi 0, %s20
      %s23 = sphi 0, %s21
      %s24 = sphi 0, %s22
      %s36 = sphi 0, %s38
      %s39 = sphi 0, %s36
      %s40 = sphi 0, %s39
      %s56 = sphi 0, %s40
      %s60 = sphi 0, %s60
      %s62 = sphi 0, %s60
      %s63 = sphi 0, %s62
      %s77 = sphi 0, %s63
      %s81 = sphi 0, %s81
      %s83 = sphi 0, %s81
      %s84 = sphi 0, %s83
      %s98 = sphi 0, %s84
      %s106 = sphi 0, %s108
      %s109 = sphi 0, %s106
      %s110 = sphi 0, %s109
      %s126 = sphi 0, %s110
    $region4: #{tpu_custom_call.1} parent=1 // loop_header_branch
      %15 = sbr.rel (%p13) target = $region8
    $region5: #{tpu_custom_call.1} parent=1 // loop_body
      %s17 = ssub.s32 %s12, 1
      %s18 = ssub.s32 %s12, 2
      %s25 = sadd.s32 1, %s20
      %p26 = scmp.ge.s32.totalorder %s25, 1
      %s27 = scalar_select %p26, 0, %s25
      %s28 = sadd.s32 1, %s19
      %s29 = scalar_select %p26, %s28, %s19
      %p30 = scmp.ge.s32.totalorder %s29, 2
      %s31 = scalar_select %p30, 0, %s29
      %s32 = ssub.s32 %s19, %s31
      %s33 = ssub.s32 %s20, %s27
      %s34 = sor.u32 %s32, %s33
      %p35 = scmp.eq.s32.totalorder %s34, 0
      %s37 = sadd.s32 %s36, 1
      %s38 = scalar_select %p35, %s36, %s37
      %p41 = pneg %p35
      %p42 = scmp.eq.s32.totalorder %s12, 1
      %p43 = por %p41, %p42
      %p44 = scmp.ne.s32.totalorder %s36, %s39
      %p45 = scmp.eq.s32.totalorder %s12, 0
      %p46 = por %p44, %p45
      %p47 = scmp.ne.s32.totalorder %s36, %s39
      %p48 = scmp.eq.s32.totalorder %s17, 1
      %p49 = por %p47, %p48
      %p50 = scmp.ne.s32.totalorder %s39, %s40
      %p51 = scmp.eq.s32.totalorder %s17, 0
      %p52 = por %p50, %p51
      %p53 = scmp.ne.s32.totalorder %s39, %s40
      %p54 = scmp.eq.s32.totalorder %s18, 1
      %p55 = por %p53, %p54
      %p57 = scmp.ne.s32.totalorder %s40, %s56
      %p58 = scmp.eq.s32.totalorder %s18, 0
      %p59 = por %p57, %p58
      %s61 = sadd.s32 %s60, 1
      %p64 = scmp.eq.s32.totalorder %s12, 1
      %p65 = scmp.ne.s32.totalorder %s60, %s62
      %p66 = scmp.eq.s32.totalorder %s12, 0
      %p67 = por %p65, %p66
      %p68 = scmp.ne.s32.totalorder %s60, %s62
      %p69 = scmp.eq.s32.totalorder %s17, 1
      %p70 = por %p68, %p69
      %p71 = scmp.ne.s32.totalorder %s62, %s63
      %p72 = scmp.eq.s32.totalorder %s17, 0
      %p73 = por %p71, %p72
      %p74 = scmp.ne.s32.totalorder %s62, %s63
      %p75 = scmp.eq.s32.totalorder %s18, 1
      %p76 = por %p74, %p75
      %p78 = scmp.ne.s32.totalorder %s63, %s77
      %p79 = scmp.eq.s32.totalorder %s18, 0
      %p80 = por %p78, %p79
      %s82 = sadd.s32 %s81, 1
      %p85 = scmp.eq.s32.totalorder %s12, 1
      %p86 = scmp.ne.s32.totalorder %s81, %s83
      %p87 = scmp.eq.s32.totalorder %s12, 0
      %p88 = por %p86, %p87
      %p89 = scmp.ne.s32.totalorder %s81, %s83
      %p90 = scmp.eq.s32.totalorder %s17, 1
      %p91 = por %p89, %p90
      %p92 = scmp.ne.s32.totalorder %s83, %s84
      %p93 = scmp.eq.s32.totalorder %s17, 0
      %p94 = por %p92, %p93
      %p95 = scmp.ne.s32.totalorder %s83, %s84
      %p96 = scmp.eq.s32.totalorder %s18, 1
      %p97 = por %p95, %p96
      %p99 = scmp.ne.s32.totalorder %s84, %s98
      %p100 = scmp.eq.s32.totalorder %s18, 0
      %p101 = por %p99, %p100
      %s102 = ssub.s32 %s19, %s31
      %s103 = ssub.s32 %s20, %s27
      %s104 = sor.u32 %s102, %s103
      %p105 = scmp.eq.s32.totalorder %s104, 0
      %s107 = sadd.s32 %s106, 1
      %s108 = scalar_select %p105, %s106, %s107
      %p111 = pneg %p105
      %p112 = scmp.eq.s32.totalorder %s12, 1
      %p113 = por %p111, %p112
      %p114 = scmp.ne.s32.totalorder %s106, %s109
      %p115 = scmp.eq.s32.totalorder %s12, 0
      %p116 = por %p114, %p115
      %p117 = scmp.ne.s32.totalorder %s106, %s109
      %p118 = scmp.eq.s32.totalorder %s17, 1
      %p119 = por %p117, %p118
      %p120 = scmp.ne.s32.totalorder %s109, %s110
      %p121 = scmp.eq.s32.totalorder %s17, 0
      %p122 = por %p120, %p121
      %p123 = scmp.ne.s32.totalorder %s109, %s110
      %p124 = scmp.eq.s32.totalorder %s18, 1
      %p125 = por %p123, %p124
      %p127 = scmp.ne.s32.totalorder %s110, %s126
      %p128 = scmp.eq.s32.totalorder %s18, 0
      %p129 = por %p127, %p128
      %p130 = scmp.le.s32.totalorder 1, %s12
      %p131 = scmp.lt.s32.totalorder %s12, 3
      %p132 = pnand %p130, %p131
      %p133 = pneg %p132
      // Predicated region
      $region9: #{tpu_custom_call.1} parent=5 // pred_check
        _
      $region10: #{tpu_custom_call.1} parent=5 // pred_check_branch
        %135 = sbr.rel (%p132) target = $region12
      $region11: #{tpu_custom_call.1} parent=5 // pred_region
        %s136 = ssub.s32 %s12, 1
        // Predicated region
        $region13: #{tpu_custom_call.1} parent=11 // pred_check
          %p137 = pneg %p73
        $region14: #{tpu_custom_call.1} parent=11 // pred_check_branch
          %139 = sbr.rel (%p137) target = $region16
        $region15: #{tpu_custom_call.1} parent=11 // pred_region
          _
        $region16: #{tpu_custom_call.1} parent=11 // pred_fallthru
          _
        // Predicated region
        $region17: #{tpu_custom_call.1} parent=11 // pred_check
          %p140 = pneg %p94
        $region18: #{tpu_custom_call.1} parent=11 // pred_check_branch
          %142 = sbr.rel (%p140) target = $region20
        $region19: #{tpu_custom_call.1} parent=11 // pred_region
          _
        $region20: #{tpu_custom_call.1} parent=11 // pred_fallthru
          _
      $region12: #{tpu_custom_call.1} parent=5 // pred_fallthru
        _
      %p143 = scmp.lt.s32.totalorder %s12, 2
      // Predicated region
      $region21: #{tpu_custom_call.1} parent=5 // pred_check
        %p144 = pneg %p143
      $region22: #{tpu_custom_call.1} parent=5 // pred_check_branch
        %146 = sbr.rel (%p144) target = $region24
      $region23: #{tpu_custom_call.1} parent=5 // pred_region
        // Predicated region
        $region25: #{tpu_custom_call.1} parent=23 // pred_check
          %p147 = pneg %p46
        $region26: #{tpu_custom_call.1} parent=23 // pred_check_branch
          %149 = sbr.rel (%p147) target = $region28
        $region27: #{tpu_custom_call.1} parent=23 // pred_region
          %s150 = smul.u32 2, %s20
          %p151 = scmp.lt.s32.totalorder %s19, 1
          %s152 = scalar_select %p151, %s19, 1
          %p153 = scmp.lt.s32.totalorder %s150, 1
          %s154 = scalar_select %p153, %s150, 1
          %s155 = smul.addr %s152, 2
          %s156 = sadd.s32 %s154, %s155
          %s157 = smul.addr %s156, 4
          %s158 = scalar_lea.vmem %s0, %s157
          %s159 = smul.u32 2, %s20
        $region28: #{tpu_custom_call.1} parent=23 // pred_fallthru
          _
      $region24: #{tpu_custom_call.1} parent=5 // pred_fallthru
        _
      %p160 = scmp.le.s32.totalorder 1, %s12
      %p161 = scmp.lt.s32.totalorder %s12, 3
      %p162 = pnand %p160, %p161
      %p163 = pneg %p162
      // Predicated region
      $region29: #{tpu_custom_call.1} parent=5 // pred_check
        _
      $region30: #{tpu_custom_call.1} parent=5 // pred_check_branch
        %165 = sbr.rel (%p162) target = $region32
      $region31: #{tpu_custom_call.1} parent=5 // pred_region
        %s166 = ssub.s32 %s12, 1
        %s167 = smul.u32 2, %s22
        %p168 = scmp.lt.s32.totalorder %s21, 1
        %s169 = scalar_select %p168, %s21, 1
        %p170 = scmp.lt.s32.totalorder %s167, 1
        %s171 = scalar_select %p170, %s167, 1
        %s172 = smul.addr %s169, 2
        %s173 = sadd.s32 %s171, %s172
        %s174 = smul.addr %s173, 4
        %s175 = scalar_lea.vmem %s0, %s174
        %p176 = pneg %p52
        %p177 = pneg %p49
        %p178 = pneg %p73
        %p179 = pneg %p70
        %p180 = pneg %p94
        %p181 = pneg %p91
        %p182 = pneg %p122
        %p183 = pneg %p119
        %s184 = sand.u32 %s109, 1
        %s185 = scalar_lea.sflag [#allocation3], %s184
        %s186 = sand.u32 %s109, 1
        %s187 = smul.addr %s186, 512
        %s188 = scalar_lea.vmem [#allocation2], %s187
        %s189 = smul.u32 2, %s22
        %p190 = scmp.lt.s32.totalorder %s21, 1
        %s191 = scalar_select %p190, %s21, 1
        %p192 = scmp.lt.s32.totalorder %s189, 1
        %s193 = scalar_select %p192, %s189, 1
        %s194 = smul.addr %s191, 2
        %s195 = sadd.s32 %s193, %s194
        %s196 = smul.addr %s195, 4
        %s197 = scalar_lea.vmem %s0, %s196
        %s198 = smul.u32 2, %s22
        %s199 = smul.u32 2, %s22
        %v200 = vld [vmem:[%s1] sm:$0xff]
        %v201 = vld [vmem:[%s1 + $0x8] sm:$0xff]
        %v202 = vld [vmem:[%s1 + $0x10] sm:$0xff]
        %v203 = vld [vmem:[%s1 + $0x18] sm:$0xff]
        %v204 = vld [vmem:[%s1 + $0x20] sm:$0xff]
        %v205 = vld [vmem:[%s1 + $0x28] sm:$0xff]
        %v206 = vld [vmem:[%s1 + $0x30] sm:$0xff]
        %v207 = vld [vmem:[%s1 + $0x38] sm:$0xff]
        %v208 = vld [vmem:[%s1 + $0x40] sm:$0xff]
        %v209 = vld [vmem:[%s1 + $0x48] sm:$0xff]
        %v210 = vld [vmem:[%s1 + $0x50] sm:$0xff]
        %v211 = vld [vmem:[%s1 + $0x58] sm:$0xff]
        %v212 = vld [vmem:[%s1 + $0x60] sm:$0xff]
        %v213 = vld [vmem:[%s1 + $0x68] sm:$0xff]
        %v214 = vld [vmem:[%s1 + $0x70] sm:$0xff]
        %v215 = vld [vmem:[%s1 + $0x78] sm:$0xff]
        %v216 = vld [vmem:[%s1 + $0x80] sm:$0xff]
        %v217 = vld [vmem:[%s1 + $0x88] sm:$0xff]
        %v218 = vld [vmem:[%s1 + $0x90] sm:$0xff]
        %v219 = vld [vmem:[%s1 + $0x98] sm:$0xff]
        %v220 = vld [vmem:[%s1 + $0xa0] sm:$0xff]
        %v221 = vld [vmem:[%s1 + $0xa8] sm:$0xff]
        %v222 = vld [vmem:[%s1 + $0xb0] sm:$0xff]
        %v223 = vld [vmem:[%s1 + $0xb8] sm:$0xff]
        %v224 = vld [vmem:[%s1 + $0xc0] sm:$0xff]
        %v225 = vld [vmem:[%s1 + $0xc8] sm:$0xff]
        %v226 = vld [vmem:[%s1 + $0xd0] sm:$0xff]
        %v227 = vld [vmem:[%s1 + $0xd8] sm:$0xff]
        %v228 = vld [vmem:[%s1 + $0xe0] sm:$0xff]
        %v229 = vld [vmem:[%s1 + $0xe8] sm:$0xff]
        %v230 = vld [vmem:[%s1 + $0xf0] sm:$0xff]
        %v231 = vld [vmem:[%s1 + $0xf8] sm:$0xff]
        %v232 = vld [vmem:[%s197] sm:$0xff]
        %v233 = vld [vmem:[%s2] sm:$0xff]
        %v234 = vld [vmem:[%s2 + $0x8] sm:$0xff]
        %v235 = vld [vmem:[%s2 + $0x10] sm:$0xff]
        %v236 = vld [vmem:[%s2 + $0x18] sm:$0xff]
        %v237 = vld [vmem:[%s2 + $0x20] sm:$0xff]
        %v238 = vld [vmem:[%s2 + $0x28] sm:$0xff]
        %v239 = vld [vmem:[%s2 + $0x30] sm:$0xff]
        %v240 = vld [vmem:[%s2 + $0x38] sm:$0xff]
        %v241 = vld [vmem:[%s2 + $0x40] sm:$0xff]
        %v242 = vld [vmem:[%s2 + $0x48] sm:$0xff]
        %v243 = vld [vmem:[%s2 + $0x50] sm:$0xff]
        %v244 = vld [vmem:[%s2 + $0x58] sm:$0xff]
        %v245 = vld [vmem:[%s2 + $0x60] sm:$0xff]
        %v246 = vld [vmem:[%s2 + $0x68] sm:$0xff]
        %v247 = vld [vmem:[%s2 + $0x70] sm:$0xff]
        %v248 = vld [vmem:[%s2 + $0x78] sm:$0xff]
        %v249 = vld [vmem:[%s2 + $0x80] sm:$0xff]
        %v250 = vld [vmem:[%s2 + $0x88] sm:$0xff]
        %v251 = vld [vmem:[%s2 + $0x90] sm:$0xff]
        %v252 = vld [vmem:[%s2 + $0x98] sm:$0xff]
        %v253 = vld [vmem:[%s2 + $0xa0] sm:$0xff]
        %v254 = vld [vmem:[%s2 + $0xa8] sm:$0xff]
        %v255 = vld [vmem:[%s2 + $0xb0] sm:$0xff]
        %v256 = vld [vmem:[%s2 + $0xb8] sm:$0xff]
        %v257 = vld [vmem:[%s2 + $0xc0] sm:$0xff]
        %v258 = vld [vmem:[%s2 + $0xc8] sm:$0xff]
        %v259 = vld [vmem:[%s2 + $0xd0] sm:$0xff]
        %v260 = vld [vmem:[%s2 + $0xd8] sm:$0xff]
        %v261 = vld [vmem:[%s2 + $0xe0] sm:$0xff]
        %v262 = vld [vmem:[%s2 + $0xe8] sm:$0xff]
        %v263 = vld [vmem:[%s2 + $0xf0] sm:$0xff]
        %v264 = vld [vmem:[%s2 + $0xf8] sm:$0xff]
        %266 = vset.pattern.permute.xlu0 0
        %267 = vperm.xlu0 %266, %v233
        %v268 = vpop.permute.xlu0 %267
        %271 = vset.pattern.permute.xlu0 0
        %272 = vperm.xlu0 %271, %v234
        %v273 = vpop.permute.xlu0 %272
        %276 = vset.pattern.permute.xlu0 0
        %277 = vperm.xlu0 %276, %v235
        %v278 = vpop.permute.xlu0 %277
        %281 = vset.pattern.permute.xlu0 0
        %282 = vperm.xlu0 %281, %v236
        %v283 = vpop.permute.xlu0 %282
        %286 = vset.pattern.permute.xlu0 0
        %287 = vperm.xlu0 %286, %v237
        %v288 = vpop.permute.xlu0 %287
        %291 = vset.pattern.permute.xlu0 0
        %292 = vperm.xlu0 %291, %v238
        %v293 = vpop.permute.xlu0 %292
        %296 = vset.pattern.permute.xlu0 0
        %297 = vperm.xlu0 %296, %v239
        %v298 = vpop.permute.xlu0 %297
        %301 = vset.pattern.permute.xlu0 0
        %302 = vperm.xlu0 %301, %v240
        %v303 = vpop.permute.xlu0 %302
        %306 = vset.pattern.permute.xlu0 0
        %307 = vperm.xlu0 %306, %v241
        %v308 = vpop.permute.xlu0 %307
        %311 = vset.pattern.permute.xlu0 0
        %312 = vperm.xlu0 %311, %v242
        %v313 = vpop.permute.xlu0 %312
        %316 = vset.pattern.permute.xlu0 0
        %317 = vperm.xlu0 %316, %v243
        %v318 = vpop.permute.xlu0 %317
        %321 = vset.pattern.permute.xlu0 0
        %322 = vperm.xlu0 %321, %v244
        %v323 = vpop.permute.xlu0 %322
        %326 = vset.pattern.permute.xlu0 0
        %327 = vperm.xlu0 %326, %v245
        %v328 = vpop.permute.xlu0 %327
        %331 = vset.pattern.permute.xlu0 0
        %332 = vperm.xlu0 %331, %v246
        %v333 = vpop.permute.xlu0 %332
        %336 = vset.pattern.permute.xlu0 0
        %337 = vperm.xlu0 %336, %v247
        %v338 = vpop.permute.xlu0 %337
        %341 = vset.pattern.permute.xlu0 0
        %342 = vperm.xlu0 %341, %v248
        %v343 = vpop.permute.xlu0 %342
        %346 = vset.pattern.permute.xlu0 0
        %347 = vperm.xlu0 %346, %v249
        %v348 = vpop.permute.xlu0 %347
        %351 = vset.pattern.permute.xlu0 0
        %352 = vperm.xlu0 %351, %v250
        %v353 = vpop.permute.xlu0 %352
        %356 = vset.pattern.permute.xlu0 0
        %357 = vperm.xlu0 %356, %v251
        %v358 = vpop.permute.xlu0 %357
        %361 = vset.pattern.permute.xlu0 0
        %362 = vperm.xlu0 %361, %v252
        %v363 = vpop.permute.xlu0 %362
        %366 = vset.pattern.permute.xlu0 0
        %367 = vperm.xlu0 %366, %v253
        %v368 = vpop.permute.xlu0 %367
        %371 = vset.pattern.permute.xlu0 0
        %372 = vperm.xlu0 %371, %v254
        %v373 = vpop.permute.xlu0 %372
        %376 = vset.pattern.permute.xlu0 0
        %377 = vperm.xlu0 %376, %v255
        %v378 = vpop.permute.xlu0 %377
        %381 = vset.pattern.permute.xlu0 0
        %382 = vperm.xlu0 %381, %v256
        %v383 = vpop.permute.xlu0 %382
        %386 = vset.pattern.permute.xlu0 0
        %387 = vperm.xlu0 %386, %v257
        %v388 = vpop.permute.xlu0 %387
        %391 = vset.pattern.permute.xlu0 0
        %392 = vperm.xlu0 %391, %v258
        %v393 = vpop.permute.xlu0 %392
        %396 = vset.pattern.permute.xlu0 0
        %397 = vperm.xlu0 %396, %v259
        %v398 = vpop.permute.xlu0 %397
        %401 = vset.pattern.permute.xlu0 0
        %402 = vperm.xlu0 %401, %v260
        %v403 = vpop.permute.xlu0 %402
        %406 = vset.pattern.permute.xlu0 0
        %407 = vperm.xlu0 %406, %v261
        %v408 = vpop.permute.xlu0 %407
        %411 = vset.pattern.permute.xlu0 0
        %412 = vperm.xlu0 %411, %v262
        %v413 = vpop.permute.xlu0 %412
        %416 = vset.pattern.permute.xlu0 0
        %417 = vperm.xlu0 %416, %v263
        %v418 = vpop.permute.xlu0 %417
        %421 = vset.pattern.permute.xlu0 0
        %422 = vperm.xlu0 %421, %v264
        %v423 = vpop.permute.xlu0 %422
        %v426 = vcombine.high %v232, %v232
        %vm427 = vcmask 31744
        %v429 = vsel %vm427, %v200, 0
        %v432 = vsel %vm427, %v201, 0
        %v435 = vsel %vm427, %v202, 0
        %v438 = vsel %vm427, %v203, 0
        %v441 = vsel %vm427, %v204, 0
        %v444 = vsel %vm427, %v205, 0
        %v447 = vsel %vm427, %v206, 0
        %v450 = vsel %vm427, %v207, 0
        %v453 = vsel %vm427, %v208, 0
        %v456 = vsel %vm427, %v209, 0
        %v459 = vsel %vm427, %v210, 0
        %v462 = vsel %vm427, %v211, 0
        %v465 = vsel %vm427, %v212, 0
        %v468 = vsel %vm427, %v213, 0
        %v471 = vsel %vm427, %v214, 0
        %v474 = vsel %vm427, %v215, 0
        %v477 = vsel %vm427, %v216, 0
        %v480 = vsel %vm427, %v217, 0
        %v483 = vsel %vm427, %v218, 0
        %v486 = vsel %vm427, %v219, 0
        %v489 = vsel %vm427, %v220, 0
        %v492 = vsel %vm427, %v221, 0
        %v495 = vsel %vm427, %v222, 0
        %v498 = vsel %vm427, %v223, 0
        %v501 = vsel %vm427, %v224, 0
        %v504 = vsel %vm427, %v225, 0
        %v507 = vsel %vm427, %v226, 0
        %v510 = vsel %vm427, %v227, 0
        %v513 = vsel %vm427, %v228, 0
        %v516 = vsel %vm427, %v229, 0
        %v519 = vsel %vm427, %v230, 0
        %v522 = vsel %vm427, %v231, 0
        %vm524 = vcmask 1043456
        %v525 = vsel %vm524, %v232, 0
        %v527 = vsel %vm524, %v426, 0
        %529 = vmatprep.subr.mxu0 %v527
        %530 = vmatpush1.msra.mxu0 %v525
        %531 = vmatprep.subr.mxu0 0.0
        %532 = vmatpush1.msra.mxu0 0.0
        %533 = vmatprep.subr.mxu0 0.0
        %534 = vmatpush1.msra.mxu0 0.0
        %535 = vmatprep.subr.mxu0 0.0
        %536 = vmatpush1.msra.mxu0 0.0
        %537 = vmatprep.subr.mxu0 0.0
        %538 = vmatpush1.msra.mxu0 0.0
        %539 = vmatprep.subr.mxu0 0.0
        %540 = vmatpush1.msra.mxu0 0.0
        %541 = vmatprep.subr.mxu0 0.0
        %542 = vmatpush1.msra.mxu0 0.0
        %543 = vmatprep.subr.mxu0 0.0
        %544 = vmatpush1.msra.mxu0 0.0
        %545 = vmatprep.subr.mxu0 0.0
        %546 = vmatpush1.msra.mxu0 0.0
        %547 = vmatprep.subr.mxu0 0.0
        %548 = vmatpush1.msra.mxu0 0.0
        %549 = vmatprep.subr.mxu0 0.0
        %550 = vmatpush1.msra.mxu0 0.0
        %551 = vmatprep.subr.mxu0 0.0
        %552 = vmatpush1.msra.mxu0 0.0
        %553 = vmatprep.subr.mxu0 0.0
        %554 = vmatpush1.msra.mxu0 0.0
        %555 = vmatprep.subr.mxu0 0.0
        %556 = vmatpush1.msra.mxu0 0.0
        %557 = vmatprep.subr.mxu0 0.0
        %558 = vmatpush1.msra.mxu0 0.0
        %559 = vmatprep.subr.mxu0 0.0
        %560 = vmatpush1.msra.mxu0 0.0
        %561 = vmatprep.subr.mxu0 0.0
        %562 = vmatpush1.msra.mxu0 0.0
        %563 = vmatprep.subr.mxu0 0.0
        %564 = vmatpush1.msra.mxu0 0.0
        %565 = vmatprep.subr.mxu0 0.0
        %566 = vmatpush1.msra.mxu0 0.0
        %567 = vmatprep.subr.mxu0 0.0
        %568 = vmatpush1.msra.mxu0 0.0
        %569 = vmatprep.subr.mxu0 0.0
        %570 = vmatpush1.msra.mxu0 0.0
        %571 = vmatprep.subr.mxu0 0.0
        %572 = vmatpush1.msra.mxu0 0.0
        %573 = vmatprep.subr.mxu0 0.0
        %574 = vmatpush1.msra.mxu0 0.0
        %575 = vmatprep.subr.mxu0 0.0
        %576 = vmatpush1.msra.mxu0 0.0
        %577 = vmatprep.subr.mxu0 0.0
        %578 = vmatpush1.msra.mxu0 0.0
        %579 = vmatprep.subr.mxu0 0.0
        %580 = vmatpush1.msra.mxu0 0.0
        %581 = vmatprep.subr.mxu0 0.0
        %582 = vmatpush1.msra.mxu0 0.0
        %583 = vmatprep.subr.mxu0 0.0
        %584 = vmatpush1.msra.mxu0 0.0
        %585 = vmatprep.subr.mxu0 0.0
        %586 = vmatpush1.msra.mxu0 0.0
        %587 = vmatprep.subr.mxu0 0.0
        %588 = vmatpush1.msra.mxu0 0.0
        %589 = vmatprep.subr.mxu0 0.0
        %590 = vmatpush1.msra.mxu0 0.0
        %591 = vmatprep.subr.mxu0 0.0
        %592 = vmatpush1.msra.mxu0 0.0
        %593 = vmatprep.mubr.f32.mxu0 0.0
        %594 = vmatmul.mubr.f32.gmra.mrb[0].mxu0 %v429
        %v595 = vpop.f32.mrb[0].mxu0
        %v596 = vadd.f32 %v268, %v595
        %v597 = vpop.f32.mrb[0].mxu0
        %v598 = vadd.f32 %v268, %v597
        %599 = vmatprep.mubr.f32.mxu0 0.0
        %600 = vmatmul.mubr.f32.gmra.mrb[0].mxu0 %v432
        %v601 = vpop.f32.mrb[0].mxu0
        %v602 = vadd.f32 %v273, %v601
        %v603 = vpop.f32.mrb[0].mxu0
        %v604 = vadd.f32 %v273, %v603
        %605 = vmatprep.mubr.f32.mxu0 0.0
        %606 = vmatmul.mubr.f32.gmra.mrb[0].mxu0 %v435
        %v607 = vpop.f32.mrb[0].mxu0
        %v608 = vadd.f32 %v278, %v607
        %v609 = vpop.f32.mrb[0].mxu0
        %v610 = vadd.f32 %v278, %v609
        %611 = vmatprep.mubr.f32.mxu0 0.0
        %612 = vmatmul.mubr.f32.gmra.mrb[0].mxu0 %v438
        %v613 = vpop.f32.mrb[0].mxu0
        %v614 = vadd.f32 %v283, %v613
        %v615 = vpop.f32.mrb[0].mxu0
        %v616 = vadd.f32 %v283, %v615
        %617 = vmatprep.mubr.f32.mxu0 0.0
        %618 = vmatmul.mubr.f32.gmra.mrb[0].mxu0 %v441
        %v619 = vpop.f32.mrb[0].mxu0
        %v620 = vadd.f32 %v288, %v619
        %v621 = vpop.f32.mrb[0].mxu0
        %v622 = vadd.f32 %v288, %v621
        %623 = vmatprep.mubr.f32.mxu0 0.0
        %624 = vmatmul.mubr.f32.gmra.mrb[0].mxu0 %v444
        %v625 = vpop.f32.mrb[0].mxu0
        %v626 = vadd.f32 %v293, %v625
        %v627 = vpop.f32.mrb[0].mxu0
        %v628 = vadd.f32 %v293, %v627
        %629 = vmatprep.mubr.f32.mxu0 0.0
        %630 = vmatmul.mubr.f32.gmra.mrb[0].mxu0 %v447
        %v631 = vpop.f32.mrb[0].mxu0
        %v632 = vadd.f32 %v298, %v631
        %v633 = vpop.f32.mrb[0].mxu0
        %v634 = vadd.f32 %v298, %v633
        %635 = vmatprep.mubr.f32.mxu0 0.0
        %636 = vmatmul.mubr.f32.gmra.mrb[0].mxu0 %v450
        %v637 = vpop.f32.mrb[0].mxu0
        %v638 = vadd.f32 %v303, %v637
        %v639 = vpop.f32.mrb[0].mxu0
        %v640 = vadd.f32 %v303, %v639
        %641 = vmatprep.mubr.f32.mxu0 0.0
        %642 = vmatmul.mubr.f32.gmra.mrb[0].mxu0 %v453
        %v643 = vpop.f32.mrb[0].mxu0
        %v644 = vadd.f32 %v308, %v643
        %v645 = vpop.f32.mrb[0].mxu0
        %v646 = vadd.f32 %v308, %v645
        %647 = vmatprep.mubr.f32.mxu0 0.0
        %648 = vmatmul.mubr.f32.gmra.mrb[0].mxu0 %v456
        %v649 = vpop.f32.mrb[0].mxu0
        %v650 = vadd.f32 %v313, %v649
        %v651 = vpop.f32.mrb[0].mxu0
        %v652 = vadd.f32 %v313, %v651
        %653 = vmatprep.mubr.f32.mxu0 0.0
        %654 = vmatmul.mubr.f32.gmra.mrb[0].mxu0 %v459
        %v655 = vpop.f32.mrb[0].mxu0
        %v656 = vadd.f32 %v318, %v655
        %v657 = vpop.f32.mrb[0].mxu0
        %v658 = vadd.f32 %v318, %v657
        %659 = vmatprep.mubr.f32.mxu0 0.0
        %660 = vmatmul.mubr.f32.gmra.mrb[0].mxu0 %v462
        %v661 = vpop.f32.mrb[0].mxu0
        %v662 = vadd.f32 %v323, %v661
        %v663 = vpop.f32.mrb[0].mxu0
        %v664 = vadd.f32 %v323, %v663
        %665 = vmatprep.mubr.f32.mxu0 0.0
        %666 = vmatmul.mubr.f32.gmra.mrb[0].mxu0 %v465
        %v667 = vpop.f32.mrb[0].mxu0
        %v668 = vadd.f32 %v328, %v667
        %v669 = vpop.f32.mrb[0].mxu0
        %v670 = vadd.f32 %v328, %v669
        %671 = vmatprep.mubr.f32.mxu0 0.0
        %672 = vmatmul.mubr.f32.gmra.mrb[0].mxu0 %v468
        %v673 = vpop.f32.mrb[0].mxu0
        %v674 = vadd.f32 %v333, %v673
        %v675 = vpop.f32.mrb[0].mxu0
        %v676 = vadd.f32 %v333, %v675
        %677 = vmatprep.mubr.f32.mxu0 0.0
        %678 = vmatmul.mubr.f32.gmra.mrb[0].mxu0 %v471
        %v679 = vpop.f32.mrb[0].mxu0
        %v680 = vadd.f32 %v338, %v679
        %v681 = vpop.f32.mrb[0].mxu0
        %v682 = vadd.f32 %v338, %v681
        %683 = vmatprep.mubr.f32.mxu0 0.0
        %684 = vmatmul.mubr.f32.gmra.mrb[0].mxu0 %v474
        %v685 = vpop.f32.mrb[0].mxu0
        %v686 = vadd.f32 %v343, %v685
        %v687 = vpop.f32.mrb[0].mxu0
        %v688 = vadd.f32 %v343, %v687
        %689 = vmatprep.mubr.f32.mxu0 0.0
        %690 = vmatmul.mubr.f32.gmra.mrb[0].mxu0 %v477
        %v691 = vpop.f32.mrb[0].mxu0
        %v692 = vadd.f32 %v348, %v691
        %v693 = vpop.f32.mrb[0].mxu0
        %v694 = vadd.f32 %v348, %v693
        %695 = vmatprep.mubr.f32.mxu0 0.0
        %696 = vmatmul.mubr.f32.gmra.mrb[0].mxu0 %v480
        %v697 = vpop.f32.mrb[0].mxu0
        %v698 = vadd.f32 %v353, %v697
        %v699 = vpop.f32.mrb[0].mxu0
        %v700 = vadd.f32 %v353, %v699
        %701 = vmatprep.mubr.f32.mxu0 0.0
        %702 = vmatmul.mubr.f32.gmra.mrb[0].mxu0 %v483
        %v703 = vpop.f32.mrb[0].mxu0
        %v704 = vadd.f32 %v358, %v703
        %v705 = vpop.f32.mrb[0].mxu0
        %v706 = vadd.f32 %v358, %v705
        %707 = vmatprep.mubr.f32.mxu0 0.0
        %708 = vmatmul.mubr.f32.gmra.mrb[0].mxu0 %v486
        %v709 = vpop.f32.mrb[0].mxu0
        %v710 = vadd.f32 %v363, %v709
        %v711 = vpop.f32.mrb[0].mxu0
        %v712 = vadd.f32 %v363, %v711
        %713 = vmatprep.mubr.f32.mxu0 0.0
        %714 = vmatmul.mubr.f32.gmra.mrb[0].mxu0 %v489
        %v715 = vpop.f32.mrb[0].mxu0
        %v716 = vadd.f32 %v368, %v715
        %v717 = vpop.f32.mrb[0].mxu0
        %v718 = vadd.f32 %v368, %v717
        %719 = vmatprep.mubr.f32.mxu0 0.0
        %720 = vmatmul.mubr.f32.gmra.mrb[0].mxu0 %v492
        %v721 = vpop.f32.mrb[0].mxu0
        %v722 = vadd.f32 %v373, %v721
        %v723 = vpop.f32.mrb[0].mxu0
        %v724 = vadd.f32 %v373, %v723
        %725 = vmatprep.mubr.f32.mxu0 0.0
        %726 = vmatmul.mubr.f32.gmra.mrb[0].mxu0 %v495
        %v727 = vpop.f32.mrb[0].mxu0
        %v728 = vadd.f32 %v378, %v727
        %v729 = vpop.f32.mrb[0].mxu0
        %v730 = vadd.f32 %v378, %v729
        %731 = vmatprep.mubr.f32.mxu0 0.0
        %732 = vmatmul.mubr.f32.gmra.mrb[0].mxu0 %v498
        %v733 = vpop.f32.mrb[0].mxu0
        %v734 = vadd.f32 %v383, %v733
        %v735 = vpop.f32.mrb[0].mxu0
        %v736 = vadd.f32 %v383, %v735
        %737 = vmatprep.mubr.f32.mxu0 0.0
        %738 = vmatmul.mubr.f32.gmra.mrb[0].mxu0 %v501
        %v739 = vpop.f32.mrb[0].mxu0
        %v740 = vadd.f32 %v388, %v739
        %v741 = vpop.f32.mrb[0].mxu0
        %v742 = vadd.f32 %v388, %v741
        %743 = vmatprep.mubr.f32.mxu0 0.0
        %744 = vmatmul.mubr.f32.gmra.mrb[0].mxu0 %v504
        %v745 = vpop.f32.mrb[0].mxu0
        %v746 = vadd.f32 %v393, %v745
        %v747 = vpop.f32.mrb[0].mxu0
        %v748 = vadd.f32 %v393, %v747
        %749 = vmatprep.mubr.f32.mxu0 0.0
        %750 = vmatmul.mubr.f32.gmra.mrb[0].mxu0 %v507
        %v751 = vpop.f32.mrb[0].mxu0
        %v752 = vadd.f32 %v398, %v751
        %v753 = vpop.f32.mrb[0].mxu0
        %v754 = vadd.f32 %v398, %v753
        %755 = vmatprep.mubr.f32.mxu0 0.0
        %756 = vmatmul.mubr.f32.gmra.mrb[0].mxu0 %v510
        %v757 = vpop.f32.mrb[0].mxu0
        %v758 = vadd.f32 %v403, %v757
        %v759 = vpop.f32.mrb[0].mxu0
        %v760 = vadd.f32 %v403, %v759
        %761 = vmatprep.mubr.f32.mxu0 0.0
        %762 = vmatmul.mubr.f32.gmra.mrb[0].mxu0 %v513
        %v763 = vpop.f32.mrb[0].mxu0
        %v764 = vadd.f32 %v408, %v763
        %v765 = vpop.f32.mrb[0].mxu0
        %v766 = vadd.f32 %v408, %v765
        %767 = vmatprep.mubr.f32.mxu0 0.0
        %768 = vmatmul.mubr.f32.gmra.mrb[0].mxu0 %v516
        %v769 = vpop.f32.mrb[0].mxu0
        %v770 = vadd.f32 %v413, %v769
        %v771 = vpop.f32.mrb[0].mxu0
        %v772 = vadd.f32 %v413, %v771
        %773 = vmatprep.mubr.f32.mxu0 0.0
        %774 = vmatmul.mubr.f32.gmra.mrb[0].mxu0 %v519
        %v775 = vpop.f32.mrb[0].mxu0
        %v776 = vadd.f32 %v418, %v775
        %v777 = vpop.f32.mrb[0].mxu0
        %v778 = vadd.f32 %v418, %v777
        %779 = vmatprep.mubr.f32.mxu0 0.0
        %780 = vmatmul.mubr.f32.gmra.mrb[0].mxu0 %v522
        %v781 = vpop.f32.mrb[0].mxu0
        %v782 = vadd.f32 %v423, %v781
        %v783 = vpop.f32.mrb[0].mxu0
        %v784 = vadd.f32 %v423, %v783
        %785 = vdwg.mxu0
        %v786 = vmax.f32 %v596, 0.0
        %v787 = vmax.f32 %v598, 0.0
        %v788 = vmax.f32 %v602, 0.0
        %v789 = vmax.f32 %v604, 0.0
        %v790 = vmax.f32 %v608, 0.0
        %v791 = vmax.f32 %v610, 0.0
        %v792 = vmax.f32 %v614, 0.0
        %v793 = vmax.f32 %v616, 0.0
        %v794 = vmax.f32 %v620, 0.0
        %v795 = vmax.f32 %v622, 0.0
        %v796 = vmax.f32 %v626, 0.0
        %v797 = vmax.f32 %v628, 0.0
        %v798 = vmax.f32 %v632, 0.0
        %v799 = vmax.f32 %v634, 0.0
        %v800 = vmax.f32 %v638, 0.0
        %v801 = vmax.f32 %v640, 0.0
        %v802 = vmax.f32 %v644, 0.0
        %v803 = vmax.f32 %v646, 0.0
        %v804 = vmax.f32 %v650, 0.0
        %v805 = vmax.f32 %v652, 0.0
        %v806 = vmax.f32 %v656, 0.0
        %v807 = vmax.f32 %v658, 0.0
        %v808 = vmax.f32 %v662, 0.0
        %v809 = vmax.f32 %v664, 0.0
        %v810 = vmax.f32 %v668, 0.0
        %v811 = vmax.f32 %v670, 0.0
        %v812 = vmax.f32 %v674, 0.0
        %v813 = vmax.f32 %v676, 0.0
        %v814 = vmax.f32 %v680, 0.0
        %v815 = vmax.f32 %v682, 0.0
        %v816 = vmax.f32 %v686, 0.0
        %v817 = vmax.f32 %v688, 0.0
        %v818 = vmax.f32 %v692, 0.0
        %v819 = vmax.f32 %v694, 0.0
        %v820 = vmax.f32 %v698, 0.0
        %v821 = vmax.f32 %v700, 0.0
        %v822 = vmax.f32 %v704, 0.0
        %v823 = vmax.f32 %v706, 0.0
        %v824 = vmax.f32 %v710, 0.0
        %v825 = vmax.f32 %v712, 0.0
        %v826 = vmax.f32 %v716, 0.0
        %v827 = vmax.f32 %v718, 0.0
        %v828 = vmax.f32 %v722, 0.0
        %v829 = vmax.f32 %v724, 0.0
        %v830 = vmax.f32 %v728, 0.0
        %v831 = vmax.f32 %v730, 0.0
        %v832 = vmax.f32 %v734, 0.0
        %v833 = vmax.f32 %v736, 0.0
        %v834 = vmax.f32 %v740, 0.0
        %v835 = vmax.f32 %v742, 0.0
        %v836 = vmax.f32 %v746, 0.0
        %v837 = vmax.f32 %v748, 0.0
        %v838 = vmax.f32 %v752, 0.0
        %v839 = vmax.f32 %v754, 0.0
        %v840 = vmax.f32 %v758, 0.0
        %v841 = vmax.f32 %v760, 0.0
        %v842 = vmax.f32 %v764, 0.0
        %v843 = vmax.f32 %v766, 0.0
        %v844 = vmax.f32 %v770, 0.0
        %v845 = vmax.f32 %v772, 0.0
        %v846 = vmax.f32 %v776, 0.0
        %v847 = vmax.f32 %v778, 0.0
        %v848 = vmax.f32 %v782, 0.0
        %v849 = vmax.f32 %v784, 0.0
        %850 = vst [vmem:[%s188] sm:$0xff] %v786
        %851 = vst [vmem:[%s188 + $0x8] sm:$0xff] %v787
        %852 = vst [vmem:[%s188 + $0x10] sm:$0xff] %v788
        %853 = vst [vmem:[%s188 + $0x18] sm:$0xff] %v789
        %854 = vst [vmem:[%s188 + $0x20] sm:$0xff] %v790
        %855 = vst [vmem:[%s188 + $0x28] sm:$0xff] %v791
        %856 = vst [vmem:[%s188 + $0x30] sm:$0xff] %v792
        %857 = vst [vmem:[%s188 + $0x38] sm:$0xff] %v793
        %858 = vst [vmem:[%s188 + $0x40] sm:$0xff] %v794
        %859 = vst [vmem:[%s188 + $0x48] sm:$0xff] %v795
        %860 = vst [vmem:[%s188 + $0x50] sm:$0xff] %v796
        %861 = vst [vmem:[%s188 + $0x58] sm:$0xff] %v797
        %862 = vst [vmem:[%s188 + $0x60] sm:$0xff] %v798
        %863 = vst [vmem:[%s188 + $0x68] sm:$0xff] %v799
        %864 = vst [vmem:[%s188 + $0x70] sm:$0xff] %v800
        %865 = vst [vmem:[%s188 + $0x78] sm:$0xff] %v801
        %866 = vst [vmem:[%s188 + $0x80] sm:$0xff] %v802
        %867 = vst [vmem:[%s188 + $0x88] sm:$0xff] %v803
        %868 = vst [vmem:[%s188 + $0x90] sm:$0xff] %v804
        %869 = vst [vmem:[%s188 + $0x98] sm:$0xff] %v805
        %870 = vst [vmem:[%s188 + $0xa0] sm:$0xff] %v806
        %871 = vst [vmem:[%s188 + $0xa8] sm:$0xff] %v807
        %872 = vst [vmem:[%s188 + $0xb0] sm:$0xff] %v808
        %873 = vst [vmem:[%s188 + $0xb8] sm:$0xff] %v809
        %874 = vst [vmem:[%s188 + $0xc0] sm:$0xff] %v810
        %875 = vst [vmem:[%s188 + $0xc8] sm:$0xff] %v811
        %876 = vst [vmem:[%s188 + $0xd0] sm:$0xff] %v812
        %877 = vst [vmem:[%s188 + $0xd8] sm:$0xff] %v813
        %878 = vst [vmem:[%s188 + $0xe0] sm:$0xff] %v814
        %879 = vst [vmem:[%s188 + $0xe8] sm:$0xff] %v815
        %880 = vst [vmem:[%s188 + $0xf0] sm:$0xff] %v816
        %881 = vst [vmem:[%s188 + $0xf8] sm:$0xff] %v817
        %882 = vst [vmem:[%s188 + $0x100] sm:$0xff] %v818
        %883 = vst [vmem:[%s188 + $0x108] sm:$0xff] %v819
        %884 = vst [vmem:[%s188 + $0x110] sm:$0xff] %v820
        %885 = vst [vmem:[%s188 + $0x118] sm:$0xff] %v821
        %886 = vst [vmem:[%s188 + $0x120] sm:$0xff] %v822
        %887 = vst [vmem:[%s188 + $0x128] sm:$0xff] %v823
        %888 = vst [vmem:[%s188 + $0x130] sm:$0xff] %v824
        %889 = vst [vmem:[%s188 + $0x138] sm:$0xff] %v825
        %890 = vst [vmem:[%s188 + $0x140] sm:$0xff] %v826
        %891 = vst [vmem:[%s188 + $0x148] sm:$0xff] %v827
        %892 = vst [vmem:[%s188 + $0x150] sm:$0xff] %v828
        %893 = vst [vmem:[%s188 + $0x158] sm:$0xff] %v829
        %894 = vst [vmem:[%s188 + $0x160] sm:$0xff] %v830
        %895 = vst [vmem:[%s188 + $0x168] sm:$0xff] %v831
        %896 = vst [vmem:[%s188 + $0x170] sm:$0xff] %v832
        %897 = vst [vmem:[%s188 + $0x178] sm:$0xff] %v833
        %898 = vst [vmem:[%s188 + $0x180] sm:$0xff] %v834
        %899 = vst [vmem:[%s188 + $0x188] sm:$0xff] %v835
        %900 = vst [vmem:[%s188 + $0x190] sm:$0xff] %v836
        %901 = vst [vmem:[%s188 + $0x198] sm:$0xff] %v837
        %902 = vst [vmem:[%s188 + $0x1a0] sm:$0xff] %v838
        %903 = vst [vmem:[%s188 + $0x1a8] sm:$0xff] %v839
        %904 = vst [vmem:[%s188 + $0x1b0] sm:$0xff] %v840
        %905 = vst [vmem:[%s188 + $0x1b8] sm:$0xff] %v841
        %906 = vst [vmem:[%s188 + $0x1c0] sm:$0xff] %v842
        %907 = vst [vmem:[%s188 + $0x1c8] sm:$0xff] %v843
        %908 = vst [vmem:[%s188 + $0x1d0] sm:$0xff] %v844
        %909 = vst [vmem:[%s188 + $0x1d8] sm:$0xff] %v845
        %910 = vst [vmem:[%s188 + $0x1e0] sm:$0xff] %v846
        %911 = vst [vmem:[%s188 + $0x1e8] sm:$0xff] %v847
        %912 = vst [vmem:[%s188 + $0x1f0] sm:$0xff] %v848
        %913 = vst [vmem:[%s188 + $0x1f8] sm:$0xff] %v849
        %s914 = sand.u32 %s109, 1
        %s915 = scalar_lea.sflag [#allocation3], %s914
        %s916 = sand.u32 %s109, 1
        %s917 = smul.addr %s916, 512
        %s918 = scalar_lea.vmem [#allocation2], %s917
        // Predicated region
        $region33: #{tpu_custom_call.1} parent=31 // pred_check
          %p919 = pneg %p119
        $region34: #{tpu_custom_call.1} parent=31 // pred_check_branch
          %921 = sbr.rel (%p919) target = $region36
        $region35: #{tpu_custom_call.1} parent=31 // pred_region
          %s922 = smul.u32 2, %s22
          %s924 = ssub.s32 8192, 8192
          %925 = vsyncadd %s915, %s924
          %s926 = smul.addr %s21, 64
          %s927 = sadd.s32 %s922, %s926
          %s928 = smul.addr %s927, 128
          %s929 = scalar_lea.hbm %s3, %s928
          %s930 = sshll.u32 %s918, 4
          %s931 = int_to_ptr.vmem [resolvable:$true] %s930
          %936 = dma.vmem_to_hbm [thread:$0]  %s931, 8192, %s929, %s915, 256, 256, 16
        $region36: #{tpu_custom_call.1} parent=31 // pred_fallthru
          _
      $region32: #{tpu_custom_call.1} parent=5 // pred_fallthru
        _
      %p937 = scmp.le.s32.totalorder 2, %s12
      // Predicated region
      $region37: #{tpu_custom_call.1} parent=5 // pred_check
        %p938 = pneg %p937
      $region38: #{tpu_custom_call.1} parent=5 // pred_check_branch
        %940 = sbr.rel (%p938) target = $region40
      $region39: #{tpu_custom_call.1} parent=5 // pred_region
        %s941 = ssub.s32 %s12, 2
        // Predicated region
        $region41: #{tpu_custom_call.1} parent=39 // pred_check
          %p942 = pneg %p125
        $region42: #{tpu_custom_call.1} parent=39 // pred_check_branch
          %944 = sbr.rel (%p942) target = $region44
        $region43: #{tpu_custom_call.1} parent=39 // pred_region
          %s945 = sand.u32 %s110, 1
          %s946 = scalar_lea.sflag [#allocation3], %s945
          %s947 = sand.u32 %s110, 1
          %s948 = smul.addr %s947, 512
          %s949 = scalar_lea.vmem [#allocation2], %s948
          %950 = dma.done %s946, 8192
        $region44: #{tpu_custom_call.1} parent=39 // pred_fallthru
          _
      $region40: #{tpu_custom_call.1} parent=5 // pred_fallthru
        _
    $region6: #{tpu_custom_call.1} parent=1 // loop_footer
      %s16 = sadd.s32 1, %s12
    $region7: #{tpu_custom_call.1} parent=1 // loop_footer_branch
      %11 = sbr.rel target = $region3
    $region8: #{tpu_custom_call.1} parent=1 // loop_exit
      _
    %951 = vsyncpa [#allocation3], 1
    %s952 = scalar_lea.sflag [#allocation3], 1
    %953 = vsyncpa %s952, 1

</llo_original>
